<compile_context>
chip_gen: v7x
topology: tpu7x:2x2x1
jax: 0.10.0
libtpu: 0.0.40
codegen_flags: <defaults>
</compile_context>

<pallas_src>
import functools

import jax
import jax.numpy as jnp
from jax.experimental import pallas as pl
from jax.experimental.pallas import tpu as pltpu


def _round_up(x, m):
    return ((x + m - 1) // m) * m


def _vmem_limit_bytes(tt, window_size):
    """Derive the Mosaic scoped-VMEM limit from the chosen tile geometry."""
    k = 8 * window_size
    a_bytes = 2 * tt * k * 2                    # double-buffered bf16 A tiles
    w_bytes = 2 * (k * 256 * 2 + 256 * 4)       # conv GEMM weight + bias (2 bufs)
    o_bytes = 2 * 8 * 128 * 4                   # resident (8,128) f32 max block
    inter = 4 * tt * 256 * 4                    # f32 z/gate/gated intermediates
    need = a_bytes + w_bytes + o_bytes + inter + (4 << 20)
    # Clamp: >=32 MiB so the compiler never forces tiny tiles, <=96 MiB to stay
    # under v5e/v6e's 128 MiB physical VMEM.  On v7x (64 MiB physical) keep
    # row_tile <= ~768 so the derived value stays below ~48 MiB.
    return int(min(max(need, 32 << 20), 96 << 20))


def malconv_kernel(t_valid_ref, a_ref, m_ref, cb_ref, max_ref):
    """One (time-split c, batch b, time-tile t) grid step.

    t_valid_ref : (1,)  int32 SMEM  number of real (unpadded) conv windows
    a_ref       : (TT, 8*W) bf16    windowed embeddings for this (b, c, t)
    m_ref       : (8*W, 256) bf16   block-diagonal [conv_1 | conv_2] GEMM weight
    cb_ref      : (1, 256)  f32     [conv_1 bias | conv_2 bias]
    max_ref     : (8, 128)  f32     output block: per-(c,b) partial channel max,
                                    kept sublane-resolved so the per-tile reduce
                                    stays on the VPU; the final 8->1 (and
                                    cross-split) max happens in the wrapper.
    """
    c = pl.program_id(0)
    t = pl.program_id(2)
    tiles_per_split = pl.num_programs(2)
    tt = a_ref.shape[0]

    @pl.when(t == 0)
    def _():
        max_ref[...] = jnp.full(max_ref.shape, -jnp.inf, dtype=max_ref.dtype)

    # Fused conv_1 / conv_2 as one 256-lane GEMM, bf16 in / f32 accumulate.
    z = jnp.dot(a_ref[...], m_ref[...], preferred_element_type=jnp.float32)
    z = z + cb_ref[...]
    cnn = z[:, :128]
    gate = jax.nn.sigmoid(z[:, 128:])
    gated = cnn * gate                                         # (TT, 128) f32

    # Mask windows that only exist because of pad-to-tile-multiple: zero-token
    # padding still yields bias1 * sigmoid(bias2), which could win the max.
    base = (c * tiles_per_split + t) * tt
    row = base + jax.lax.broadcasted_iota(jnp.int32, (tt, 128), 0)
    gated = jnp.where(row < t_valid_ref[0], gated, -jnp.inf)

    # Pure-VPU per-tile reduction into the resident (8,128) output block; the
    # cross-sublane (XLU) reduce is deferred to the wrapper epilogue.
    tile_max = jnp.max(gated.reshape(tt // 8, 8, 128), axis=0)  # (8, 128)
    max_ref[...] = jnp.maximum(max_ref[...], tile_max)


def prepare_params(params, *, window_size):
    """One-time weight layout transforms (kept out of the forward hot path)."""
    emb, w1, c1b, w2, c2b, wfc1, bfc1, wfc2, bfc2 = params
    W = window_size
    # Conv1d(4,128,W,stride=W) recast as GEMM; both branches fused into one
    # block-diagonal (8*W, 256) weight so the conv GEMM has 256 output lanes.
    # Row index = k*8 + ch, matching the (window, channel) flattening of A.
    m1 = jnp.transpose(w1, (2, 1, 0))                     # (W, 4, 128)
    m2 = jnp.transpose(w2, (2, 1, 0))                     # (W, 4, 128)
    m_full = jnp.zeros((W, 8, 256), jnp.float32)
    m_full = m_full.at[:, 0:4, 0:128].set(m1)
    m_full = m_full.at[:, 4:8, 128:256].set(m2)
    m_full = m_full.reshape(W * 8, 256).astype(jnp.bfloat16)
    cb_full = jnp.concatenate([c1b, c2b]).reshape(1, 256).astype(jnp.float32)
    return dict(
        emb=emb.astype(jnp.bfloat16),                     # (257, 8), row 0 == 0
        m_full=m_full,                                    # (8*W, 256) bf16
        cb_full=cb_full,                                  # (1, 256) f32
        wfc1=wfc1.astype(jnp.float32),                    # fc_1 weight (128,128)
        bfc1=bfc1.astype(jnp.float32),                    # fc_1 bias (128,)
        wfc2=wfc2.astype(jnp.float32),                    # fc_2 weight (1,128)
        bfc2=bfc2.astype(jnp.float32),                    # fc_2 bias (1,)
    )


def malconv_forward(x_tokens, prep, *, window_size, row_tile=512, time_splits=2):
    """x_tokens: int32 (B, input_length); returns (B, 1) float32.

    row_tile = conv windows per grid step.  Guidance: ~512-768 on v7x (64 MiB
    VMEM), 1024-2048 on v5e/v6e (the vmem limit is derived automatically).
    time_splits = leading parallel grid axis splitting the time range so both
    v7x TensorCores are busy even at batch=1 (no effect / no harm on v5e/v6e).
    """
    B, input_length = x_tokens.shape
    W = window_size
    T = (input_length - 500) // W                         # number of conv windows

    # Tile / padding geometry (all static Python ints).
    tt = min(row_tile, _round_up(T, 8))
    tt = _round_up(tt, 8)
    T_pad = _round_up(T, time_splits * tt)
    tiles_per_split = T_pad // (time_splits * tt)

    # ---- glue (plain JAX): token slice -> embedding gather -> window rows ----
    # TODO(synk): move this gather in-kernel once Mosaic supports table-style
    # gathers; see module docstring.  Padding tokens are 0 -> zero embedding
    # rows (padding_idx=0); the kernel masks padded windows to -inf regardless.
    tok = x_tokens[:, 500:500 + T * W]
    if T_pad > T:
        tok = jnp.pad(tok, ((0, 0), (0, (T_pad - T) * W)))
    e = jnp.take(prep["emb"], tok, axis=0)                # (B, T_pad*W, 8) bf16
    a = e.reshape(B, T_pad, W * 8)                        # (window, channel) flattened

    t_valid = jnp.array([T], jnp.int32)                   # scalar-prefetched

    grid = (time_splits, B, tiles_per_split)
    partial_max = pl.pallas_call(
        malconv_kernel,
        out_shape=jax.ShapeDtypeStruct((time_splits, B, 8, 128), jnp.float32),
        grid_spec=pltpu.PrefetchScalarGridSpec(
            num_scalar_prefetch=1,
            grid=grid,
            in_specs=[
                # Windowed embeddings: tiled over (split, batch, time); batch squeezed.
                pl.BlockSpec((None, tt, W * 8),
                             lambda c, b, t, tv: (b, c * tiles_per_split + t, 0)),
                # Fused conv GEMM weight + bias: resident (constant index_map).
                # TODO(synk): pipeline_mode=pl.Buffered(1) on these constant
                # blocks would reclaim ~2 MB at W=500 on v7x.
                pl.BlockSpec((W * 8, 256), lambda c, b, t, tv: (0, 0)),
                pl.BlockSpec((1, 256), lambda c, b, t, tv: (0, 0)),
            ],
            # Output block doubles as the grid-carried max accumulator: its
            # index is constant along the innermost ("arbitrary") time axis.
            out_specs=pl.BlockSpec((None, None, 8, 128),
                                   lambda c, b, t, tv: (c, b, 0, 0)),
        ),
        compiler_params=pltpu.CompilerParams(
            dimension_semantics=("parallel", "parallel", "arbitrary"),
            vmem_limit_bytes=_vmem_limit_bytes(tt, W),
        ),
    )(t_valid, a, prep["m_full"], prep["cb_full"])

    # Epilogue in plain JAX: combine time-split partials + deferred 8-sublane
    # reduce, then the two small FCs batched over B on the MXU.
    pooled = jnp.max(partial_max, axis=(0, 2))            # (B, 128)
    h = pooled @ prep["wfc1"].T + prep["bfc1"]            # fc_1
    out = h @ prep["wfc2"].T + prep["bfc2"]               # fc_2 -> (B, 1)
    return out


def reference_forward(x_tokens, params, *, window_size):
    """Pure-JAX f32 reference with identical semantics (sanity check)."""
    emb, w1, c1b, w2, c2b, wfc1, bfc1, wfc2, bfc2 = params
    B, input_length = x_tokens.shape
    W = window_size
    T = (input_length - 500) // W
    e = jnp.take(emb, x_tokens[:, 500:500 + T * W], axis=0)   # (B, T*W, 8)
    xc = jnp.transpose(e, (0, 2, 1))                          # (B, 8, T*W)
    xw = xc.reshape(B, 8, T, W)                               # non-overlapping windows
    cnn = jnp.einsum('bctw,ocw->bot', xw[:, 0:4], w1) + c1b[None, :, None]
    gate = jax.nn.sigmoid(
        jnp.einsum('bctw,ocw->bot', xw[:, 4:8], w2) + c2b[None, :, None])
    g = cnn * gate                                            # (B, 128, T)
    pooled = jnp.max(g, axis=-1)                              # (B, 128)
    h = pooled @ wfc1.T + bfc1
    return h @ wfc2.T + bfc2


def init_params(key, *, window_size):
    ks = jax.random.split(key, 9)
    W = window_size
    emb = 0.1 * jax.random.normal(ks[0], (257, 8), jnp.float32)
    emb = emb.at[0].set(0.0)                                  # padding_idx=0
    w1 = 0.1 * jax.random.normal(ks[1], (128, 4, W), jnp.float32)
    c1b = 0.1 * jax.random.normal(ks[2], (128,), jnp.float32)
    w2 = 0.1 * jax.random.normal(ks[3], (128, 4, W), jnp.float32)
    c2b = 0.1 * jax.random.normal(ks[4], (128,), jnp.float32)
    wfc1 = 0.1 * jax.random.normal(ks[5], (128, 128), jnp.float32)
    bfc1 = 0.1 * jax.random.normal(ks[6], (128,), jnp.float32)
    wfc2 = 0.1 * jax.random.normal(ks[7], (1, 128), jnp.float32)
    bfc2 = 0.1 * jax.random.normal(ks[8], (1,), jnp.float32)
    return (emb, w1, c1b, w2, c2b, wfc1, bfc1, wfc2, bfc2)


# Small, forward-consistent demo shapes.  N_WINDOWS=50 is deliberately NOT a
# multiple of time_splits*row_tile so the pad-to-multiple + in-kernel masking
# path (and the 2-way time split) are exercised and checked vs the reference.
WINDOW_SIZE = 8
N_WINDOWS = 50
ROW_TILE = 16
TIME_SPLITS = 2
INPUT_LENGTH = 500 + WINDOW_SIZE * N_WINDOWS    # 900
BATCH = 2


if __name__ == "__main__":
    key = jax.random.PRNGKey(0)
    k_tok, k_par = jax.random.split(key)
    params = init_params(k_par, window_size=WINDOW_SIZE)
    prep = prepare_params(params, window_size=WINDOW_SIZE)
    x = jax.random.randint(k_tok, (BATCH, INPUT_LENGTH), 0, 257, dtype=jnp.int32)

    fwd = jax.jit(functools.partial(
        malconv_forward, window_size=WINDOW_SIZE,
        row_tile=ROW_TILE, time_splits=TIME_SPLITS))
    out = jax.block_until_ready(fwd(x, prep))

    ref = reference_forward(x, params, window_size=WINDOW_SIZE)
    assert out.shape == (BATCH, 1), out.shape
    # bf16 embeddings / conv GEMM weights with f32 accumulation -> loosened tol.
    assert jnp.allclose(out, ref, atol=1e-2, rtol=1e-2), (out, ref)

    print("KERNEL_OK")
</pallas_src>

<mosaic_0001>
module attributes {stable_mosaic.version = 11 : i64} {
  func.func @malconv_kernel(%arg0: i32, %arg1: i32, %arg2: i32, %arg3: memref<1xi32, #tpu.memory_space<smem>>, %arg4: memref<1x16x64xbf16, #tpu.memory_space<vmem>>, %arg5: memref<64x256xbf16, #tpu.memory_space<vmem>>, %arg6: memref<1x256xf32, #tpu.memory_space<vmem>>, %arg7: memref<1x1x8x128xf32, #tpu.memory_space<vmem>>) attributes {dimension_semantics = [#tpu.dimension_semantics<parallel>, #tpu.dimension_semantics<parallel>, #tpu.dimension_semantics<arbitrary>], iteration_bounds = array<i64: 2, 2, 2>, scalar_prefetch = 1 : i64, scratch_operands = 0 : i64, tpu.core_type = #tpu.core_type<tc>, window_params = [{transform_indices = @transform_0, window_bounds = array<i64: 1, 16, 64>}, {pipeline_mode = #tpu.pipeline_mode<synchronous>, transform_indices = @transform_1, window_bounds = array<i64: 64, 256>}, {pipeline_mode = #tpu.pipeline_mode<synchronous>, transform_indices = @transform_2, window_bounds = array<i64: 1, 256>}, {transform_indices = @transform_3, window_bounds = array<i64: 1, 1, 8, 128>}]} {
    %c0_i32 = arith.constant 0 : i32
    %0 = arith.cmpi eq, %arg2, %c0_i32 : i32
    %1 = arith.extui %0 : i1 to i32
    %c0_i32_0 = arith.constant 0 : i32
    %2 = arith.cmpi ne, %1, %c0_i32_0 : i32
    scf.if %2 {
      %cst_19 = arith.constant 0xFF800000 : f32
      %37 = vector.broadcast %cst_19 : f32 to vector<8x128xf32>
      %c0_20 = arith.constant 0 : index
      %c0_21 = arith.constant 0 : index
      %c0_22 = arith.constant 0 : index
      %c0_23 = arith.constant 0 : index
      %38 = vector.load %arg7[%c0_20, %c0_21, %c0_22, %c0_23] : memref<1x1x8x128xf32, #tpu.memory_space<vmem>>, vector<1x1x8x128xf32>
      %39 = vector.shape_cast %38 : vector<1x1x8x128xf32> to vector<8x128xf32>
      %40 = vector.shape_cast %37 : vector<8x128xf32> to vector<1x1x8x128xf32>
      tpu.vector_store %arg7[%c0_20, %c0_21, %c0_22, %c0_23], %40 {strides = array<i32>} : memref<1x1x8x128xf32, #tpu.memory_space<vmem>>, vector<1x1x8x128xf32>,
    } else {
    }
    %c0 = arith.constant 0 : index
    %c0_1 = arith.constant 0 : index
    %c0_2 = arith.constant 0 : index
    %3 = vector.load %arg4[%c0, %c0_1, %c0_2] : memref<1x16x64xbf16, #tpu.memory_space<vmem>>, vector<1x16x64xbf16>
    %4 = vector.shape_cast %3 : vector<1x16x64xbf16> to vector<16x64xbf16>
    %c0_3 = arith.constant 0 : index
    %c0_4 = arith.constant 0 : index
    %5 = vector.load %arg5[%c0_3, %c0_4] : memref<64x256xbf16, #tpu.memory_space<vmem>>, vector<64x256xbf16>
    %cst = arith.constant dense<0.000000e+00> : vector<16x256xf32>
    %6 = tpu.matmul %4, %5, %cst {dimension_numbers = #tpu.dot_dimension_numbers<[1], [0], [0], [1], [0, 0, 1, 1], [], []>} : vector<16x64xbf16>, vector<64x256xbf16>, vector<16x256xf32> -> vector<16x256xf32>
    %c0_5 = arith.constant 0 : index
    %c0_6 = arith.constant 0 : index
    %7 = vector.load %arg6[%c0_5, %c0_6] : memref<1x256xf32, #tpu.memory_space<vmem>>, vector<1x256xf32>
    %8 = vector.broadcast %7 : vector<1x256xf32> to vector<16x256xf32>
    %9 = arith.addf %6, %8 : vector<16x256xf32>
    %10 = vector.extract_strided_slice %9 {offsets = [0, 0], sizes = [16, 128], strides = [1, 1]} : vector<16x256xf32> to vector<16x128xf32>
    %11 = vector.extract_strided_slice %9 {offsets = [0, 128], sizes = [16, 128], strides = [1, 1]} : vector<16x256xf32> to vector<16x128xf32>
    %12 = arith.negf %11 : vector<16x128xf32>
    %13 = math.exp %12 : vector<16x128xf32>
    %cst_7 = arith.constant 1.000000e+00 : f32
    %14 = vector.broadcast %cst_7 : f32 to vector<16x128xf32>
    %15 = arith.addf %14, %13 : vector<16x128xf32>
    %16 = arith.divf %14, %15 : vector<16x128xf32>
    %17 = arith.mulf %10, %16 : vector<16x128xf32>
    %c2_i32 = arith.constant 2 : i32
    %18 = arith.muli %arg0, %c2_i32 : i32
    %19 = arith.addi %18, %arg2 : i32
    %c16_i32 = arith.constant 16 : i32
    %20 = arith.muli %19, %c16_i32 : i32
    %21 = tpu.iota {dimensions = array<i32: 0>} : vector<16x128xi32>
    %22 = vector.broadcast %20 : i32 to vector<16x128xi32>
    %23 = arith.addi %22, %21 : vector<16x128xi32>
    %c0_8 = arith.constant 0 : index
    %24 = memref.load %arg3[%c0_8] : memref<1xi32, #tpu.memory_space<smem>>
    %25 = vector.broadcast %24 : i32 to vector<16x128xi32>
    %26 = arith.cmpi slt, %23, %25 : vector<16x128xi32>
    %cst_9 = arith.constant 0xFF800000 : f32
    %27 = vector.broadcast %cst_9 : f32 to vector<16x128xf32>
    %28 = arith.select %26, %17, %27 : vector<16x128xi1>, vector<16x128xf32>
    %29 = vector.shape_cast %28 : vector<16x128xf32> to vector<2x8x128xf32>
    %cst_10 = arith.constant dense<0xFF800000> : vector<8x128xf32>
    %30 = vector.multi_reduction <maximumf>, %29, %cst_10 [0] : vector<2x8x128xf32> to vector<8x128xf32>
    %c0_11 = arith.constant 0 : index
    %c0_12 = arith.constant 0 : index
    %c0_13 = arith.constant 0 : index
    %c0_14 = arith.constant 0 : index
    %31 = vector.load %arg7[%c0_11, %c0_12, %c0_13, %c0_14] : memref<1x1x8x128xf32, #tpu.memory_space<vmem>>, vector<1x1x8x128xf32>
    %32 = vector.shape_cast %31 : vector<1x1x8x128xf32> to vector<8x128xf32>
    %33 = arith.maximumf %32, %30 : vector<8x128xf32>
    %c0_15 = arith.constant 0 : index
    %c0_16 = arith.constant 0 : index
    %c0_17 = arith.constant 0 : index
    %c0_18 = arith.constant 0 : index
    %34 = vector.load %arg7[%c0_15, %c0_16, %c0_17, %c0_18] : memref<1x1x8x128xf32, #tpu.memory_space<vmem>>, vector<1x1x8x128xf32>
    %35 = vector.shape_cast %34 : vector<1x1x8x128xf32> to vector<8x128xf32>
    %36 = vector.shape_cast %33 : vector<8x128xf32> to vector<1x1x8x128xf32>
    tpu.vector_store %arg7[%c0_15, %c0_16, %c0_17, %c0_18], %36 {strides = array<i32>} : memref<1x1x8x128xf32, #tpu.memory_space<vmem>>, vector<1x1x8x128xf32>,
    return
  }
  func.func @transform_0(%arg0: i32, %arg1: i32, %arg2: i32, %arg3: memref<1xi32, #tpu.memory_space<smem>>) -> (i32, i32, i32) {
    %c2_i32 = arith.constant 2 : i32
    %0 = arith.muli %arg0, %c2_i32 : i32
    %1 = arith.addi %0, %arg2 : i32
    %c0_i32 = arith.constant 0 : i32
    %c0_i32_0 = arith.constant 0 : i32
    return %arg1, %1, %c0_i32 : i32, i32, i32
  }
  func.func @transform_1(%arg0: i32, %arg1: i32, %arg2: i32, %arg3: memref<1xi32, #tpu.memory_space<smem>>) -> (i32, i32) {
    %c0_i32 = arith.constant 0 : i32
    %c0_i32_0 = arith.constant 0 : i32
    %c0_i32_1 = arith.constant 0 : i32
    return %c0_i32, %c0_i32_0 : i32, i32
  }
  func.func @transform_2(%arg0: i32, %arg1: i32, %arg2: i32, %arg3: memref<1xi32, #tpu.memory_space<smem>>) -> (i32, i32) {
    %c0_i32 = arith.constant 0 : i32
    %c0_i32_0 = arith.constant 0 : i32
    %c0_i32_1 = arith.constant 0 : i32
    return %c0_i32, %c0_i32_0 : i32, i32
  }
  func.func @transform_3(%arg0: i32, %arg1: i32, %arg2: i32, %arg3: memref<1xi32, #tpu.memory_space<smem>>) -> (i32, i32, i32, i32) {
    %c0_i32 = arith.constant 0 : i32
    %c0_i32_0 = arith.constant 0 : i32
    %c0_i32_1 = arith.constant 0 : i32
    return %arg0, %arg1, %c0_i32, %c0_i32_0 : i32, i32, i32, i32
  }
}

</mosaic_0001>

<llo_original>
// kernel: malconv_forward.1
$region0: #{malconv_forward.1}
  #allocation0 [shape = 'u32[]', space=smem, size = 0x4, offset = 0x4, fixed_abs, tag = 'smem constant byte address 0x4 - core index']
  #allocation1 [shape = 'u32[144,128]{1,0:T(1,128)}', space=vmem, size = 0x12000, scoped, tag = 'internal scratch']
  #allocation2 [shape = 's32[1]{0}', space=sflag, size = 0x4, scoped, tag = 'scoped memory for malconv_forward.1']
  #allocation3 [shape = 's32[1]{0:T(128)S(6)}', space=smem, size = 0x200, scoped, tag = 'prefetched SMEM operand 0']
  %s0 = inlined_call_operand.<no memory space> [shape: s32[1], index: 0, kind: input, shape index: {}]
  %s1 = inlined_call_operand.vmem [shape: bf16[2,64,64], index: 1, kind: input, shape index: {}]
  %s2 = inlined_call_operand.vmem [shape: bf16[64,256], index: 2, kind: input, shape index: {}]
  %s3 = inlined_call_operand.vmem [shape: f32[1,256], index: 3, kind: input, shape index: {}]
  %s4 = inlined_call_operand.vmem [shape: f32[2,2,8,128], index: 4, kind: output, shape index: {}]
  %s5 = sld [smem:[#allocation0]]
  $region49: #{malconv_forward.1} parent=0
    _
  %s7 = ssub.s32 1, %s5
  %s8 = scalar_select 0, %s7, %s5
  %9 = sst [smem:[#allocation3]] %s0
  loop: start=0, step=1, limit=10
  $region2: #{malconv_forward.1} parent=0 // loop_pre_header
    _
  $region3: #{malconv_forward.1} parent=0 // loop_header
    %s11 = sphi 0, %s15
    %p12 = scmp.ge.s32.totalorder %s11, 10
    %s18 = sphi 0, %s37
    %s19 = sphi 0, %s33
    %s20 = sphi 0, %s29
    %s21 = sphi 0, %s18
    %s22 = sphi 0, %s19
    %s23 = sphi 0, %s20
    %s24 = sphi 0, %s21
    %s25 = sphi 0, %s22
    %s26 = sphi 0, %s23
    %s46 = sphi 0, %s48
    %s49 = sphi 0, %s46
    %s50 = sphi 0, %s49
    %s66 = sphi 0, %s50
    %s70 = sphi 0, %s70
    %s72 = sphi 0, %s70
    %s73 = sphi 0, %s72
    %s87 = sphi 0, %s73
    %s91 = sphi 0, %s91
    %s93 = sphi 0, %s91
    %s94 = sphi 0, %s93
    %s108 = sphi 0, %s94
    %s116 = sphi 0, %s118
    %s119 = sphi 0, %s116
    %s120 = sphi 0, %s119
    %s136 = sphi 0, %s120
  $region4: #{malconv_forward.1} parent=0 // loop_header_branch
    %14 = sbr.rel (%p12) target = $region8
  $region5: #{malconv_forward.1} parent=0 // loop_body
    %s16 = ssub.s32 %s11, 1
    %s17 = ssub.s32 %s11, 2
    %s27 = sadd.s32 1, %s20
    %p28 = scmp.ge.s32.totalorder %s27, 2
    %s29 = scalar_select %p28, 0, %s27
    %s30 = sadd.s32 1, %s19
    %s31 = scalar_select %p28, %s30, %s19
    %p32 = scmp.ge.s32.totalorder %s31, 2
    %s33 = scalar_select %p32, 0, %s31
    %s34 = sadd.s32 1, %s18
    %s35 = scalar_select %p32, %s34, %s18
    %p36 = scmp.ge.s32.totalorder %s35, 2
    %s37 = scalar_select %p36, 0, %s35
    %s38 = smul.u32 %s18, 2
    %s39 = sadd.s32 %s38, %s20
    %s40 = smul.u32 %s37, 2
    %s41 = sadd.s32 %s40, %s29
    %s42 = ssub.s32 %s19, %s33
    %s43 = ssub.s32 %s39, %s41
    %s44 = sor.u32 %s42, %s43
    %p45 = scmp.eq.s32.totalorder %s44, 0
    %s47 = sadd.s32 %s46, 1
    %s48 = scalar_select %p45, %s46, %s47
    %p51 = pneg %p45
    %p52 = scmp.eq.s32.totalorder %s11, 7
    %p53 = por %p51, %p52
    %p54 = scmp.ne.s32.totalorder %s46, %s49
    %p55 = scmp.eq.s32.totalorder %s11, 0
    %p56 = por %p54, %p55
    %p57 = scmp.ne.s32.totalorder %s46, %s49
    %p58 = scmp.eq.s32.totalorder %s16, 7
    %p59 = por %p57, %p58
    %p60 = scmp.ne.s32.totalorder %s49, %s50
    %p61 = scmp.eq.s32.totalorder %s16, 0
    %p62 = por %p60, %p61
    %p63 = scmp.ne.s32.totalorder %s49, %s50
    %p64 = scmp.eq.s32.totalorder %s17, 7
    %p65 = por %p63, %p64
    %p67 = scmp.ne.s32.totalorder %s50, %s66
    %p68 = scmp.eq.s32.totalorder %s17, 0
    %p69 = por %p67, %p68
    %s71 = sadd.s32 %s70, 1
    %p74 = scmp.eq.s32.totalorder %s11, 7
    %p75 = scmp.ne.s32.totalorder %s70, %s72
    %p76 = scmp.eq.s32.totalorder %s11, 0
    %p77 = por %p75, %p76
    %p78 = scmp.ne.s32.totalorder %s70, %s72
    %p79 = scmp.eq.s32.totalorder %s16, 7
    %p80 = por %p78, %p79
    %p81 = scmp.ne.s32.totalorder %s72, %s73
    %p82 = scmp.eq.s32.totalorder %s16, 0
    %p83 = por %p81, %p82
    %p84 = scmp.ne.s32.totalorder %s72, %s73
    %p85 = scmp.eq.s32.totalorder %s17, 7
    %p86 = por %p84, %p85
    %p88 = scmp.ne.s32.totalorder %s73, %s87
    %p89 = scmp.eq.s32.totalorder %s17, 0
    %p90 = por %p88, %p89
    %s92 = sadd.s32 %s91, 1
    %p95 = scmp.eq.s32.totalorder %s11, 7
    %p96 = scmp.ne.s32.totalorder %s91, %s93
    %p97 = scmp.eq.s32.totalorder %s11, 0
    %p98 = por %p96, %p97
    %p99 = scmp.ne.s32.totalorder %s91, %s93
    %p100 = scmp.eq.s32.totalorder %s16, 7
    %p101 = por %p99, %p100
    %p102 = scmp.ne.s32.totalorder %s93, %s94
    %p103 = scmp.eq.s32.totalorder %s16, 0
    %p104 = por %p102, %p103
    %p105 = scmp.ne.s32.totalorder %s93, %s94
    %p106 = scmp.eq.s32.totalorder %s17, 7
    %p107 = por %p105, %p106
    %p109 = scmp.ne.s32.totalorder %s94, %s108
    %p110 = scmp.eq.s32.totalorder %s17, 0
    %p111 = por %p109, %p110
    %s112 = ssub.s32 %s18, %s37
    %s113 = ssub.s32 %s19, %s33
    %s114 = sor.u32 %s112, %s113
    %p115 = scmp.eq.s32.totalorder %s114, 0
    %s117 = sadd.s32 %s116, 1
    %s118 = scalar_select %p115, %s116, %s117
    %p121 = pneg %p115
    %p122 = scmp.eq.s32.totalorder %s11, 7
    %p123 = por %p121, %p122
    %p124 = scmp.ne.s32.totalorder %s116, %s119
    %p125 = scmp.eq.s32.totalorder %s11, 0
    %p126 = por %p124, %p125
    %p127 = scmp.ne.s32.totalorder %s116, %s119
    %p128 = scmp.eq.s32.totalorder %s16, 7
    %p129 = por %p127, %p128
    %p130 = scmp.ne.s32.totalorder %s119, %s120
    %p131 = scmp.eq.s32.totalorder %s16, 0
    %p132 = por %p130, %p131
    %p133 = scmp.ne.s32.totalorder %s119, %s120
    %p134 = scmp.eq.s32.totalorder %s17, 7
    %p135 = por %p133, %p134
    %p137 = scmp.ne.s32.totalorder %s120, %s136
    %p138 = scmp.eq.s32.totalorder %s17, 0
    %p139 = por %p137, %p138
    %p140 = scmp.le.s32.totalorder 1, %s11
    %p141 = scmp.lt.s32.totalorder %s11, 9
    %p142 = pnand %p140, %p141
    %p143 = pneg %p142
    // Predicated region
    $region9: #{malconv_forward.1} parent=5 // pred_check
      _
    $region10: #{malconv_forward.1} parent=5 // pred_check_branch
      %145 = sbr.rel (%p142) target = $region12
    $region11: #{malconv_forward.1} parent=5 // pred_region
      %s146 = ssub.s32 %s11, 1
      // Predicated region
      $region13: #{malconv_forward.1} parent=11 // pred_check
        %p147 = pneg %p83
      $region14: #{malconv_forward.1} parent=11 // pred_check_branch
        %149 = sbr.rel (%p147) target = $region16
      $region15: #{malconv_forward.1} parent=11 // pred_region
        _
      $region16: #{malconv_forward.1} parent=11 // pred_fallthru
        _
      // Predicated region
      $region17: #{malconv_forward.1} parent=11 // pred_check
        %p150 = pneg %p104
      $region18: #{malconv_forward.1} parent=11 // pred_check_branch
        %152 = sbr.rel (%p150) target = $region20
      $region19: #{malconv_forward.1} parent=11 // pred_region
        _
      $region20: #{malconv_forward.1} parent=11 // pred_fallthru
        _
    $region12: #{malconv_forward.1} parent=5 // pred_fallthru
      _
    %p153 = scmp.lt.s32.totalorder %s11, 8
    // Predicated region
    $region21: #{malconv_forward.1} parent=5 // pred_check
      %p154 = pneg %p153
    $region22: #{malconv_forward.1} parent=5 // pred_check_branch
      %156 = sbr.rel (%p154) target = $region24
    $region23: #{malconv_forward.1} parent=5 // pred_region
      // Predicated region
      $region25: #{malconv_forward.1} parent=23 // pred_check
        %p157 = pneg %p56
      $region26: #{malconv_forward.1} parent=23 // pred_check_branch
        %159 = sbr.rel (%p157) target = $region28
      $region27: #{malconv_forward.1} parent=23 // pred_region
        %s160 = smul.u32 %s18, 2
        %s161 = sadd.s32 %s160, %s20
        %s162 = smul.u32 2, %s161
        %p163 = scmp.lt.s32.totalorder %s19, 1
        %s164 = scalar_select %p163, %s19, 1
        %p165 = scmp.lt.s32.totalorder %s162, 7
        %s166 = scalar_select %p165, %s162, 7
        %s167 = smul.addr %s164, 8
        %s168 = sadd.s32 %s166, %s167
        %s169 = smul.addr %s168, 4
        %s170 = scalar_lea.vmem %s1, %s169
        %s171 = smul.u32 %s18, 2
        %s172 = sadd.s32 %s171, %s20
        %s173 = smul.u32 2, %s172
      $region28: #{malconv_forward.1} parent=23 // pred_fallthru
        _
    $region24: #{malconv_forward.1} parent=5 // pred_fallthru
      _
    %p174 = scmp.le.s32.totalorder 1, %s11
    %p175 = scmp.lt.s32.totalorder %s11, 9
    %p176 = pnand %p174, %p175
    %p177 = pneg %p176
    // Predicated region
    $region29: #{malconv_forward.1} parent=5 // pred_check
      _
    $region30: #{malconv_forward.1} parent=5 // pred_check_branch
      %179 = sbr.rel (%p176) target = $region32
    $region31: #{malconv_forward.1} parent=5 // pred_region
      %s180 = ssub.s32 %s11, 1
      %s181 = smul.u32 %s21, 2
      %s182 = sadd.s32 %s181, %s23
      %s183 = smul.u32 2, %s182
      %p184 = scmp.lt.s32.totalorder %s22, 1
      %s185 = scalar_select %p184, %s22, 1
      %p186 = scmp.lt.s32.totalorder %s183, 7
      %s187 = scalar_select %p186, %s183, 7
      %s188 = smul.addr %s185, 8
      %s189 = sadd.s32 %s187, %s188
      %s190 = smul.addr %s189, 4
      %s191 = scalar_lea.vmem %s1, %s190
      %p192 = pneg %p62
      %p193 = pneg %p59
      %p194 = pneg %p83
      %p195 = pneg %p80
      %p196 = pneg %p104
      %p197 = pneg %p101
      %p198 = pneg %p132
      %p199 = pneg %p129
      %p200 = scmp.lt.s32.totalorder %s21, 1
      %s201 = scalar_select %p200, %s21, 1
      %p202 = scmp.lt.s32.totalorder %s22, 1
      %s203 = scalar_select %p202, %s22, 1
      %s204 = smul.addr %s201, 2
      %s205 = sadd.s32 %s203, %s204
      %s206 = smul.addr %s205, 8
      %s207 = scalar_lea.vmem %s4, %s206
      %s208 = smul.u32 %s21, 2
      %s209 = sadd.s32 %s208, %s23
      %s210 = smul.u32 2, %s209
      %p211 = scmp.lt.s32.totalorder %s22, 1
      %s212 = scalar_select %p211, %s22, 1
      %p213 = scmp.lt.s32.totalorder %s210, 7
      %s214 = scalar_select %p213, %s210, 7
      %s215 = smul.addr %s212, 8
      %s216 = sadd.s32 %s214, %s215
      %s217 = smul.addr %s216, 4
      %s218 = scalar_lea.vmem %s1, %s217
      %s219 = smul.u32 %s21, 2
      %s220 = sadd.s32 %s219, %s23
      %s221 = smul.u32 2, %s220
      %p222 = scmp.lt.s32.totalorder %s21, 1
      %s223 = scalar_select %p222, %s21, 1
      %p224 = scmp.lt.s32.totalorder %s22, 1
      %s225 = scalar_select %p224, %s22, 1
      %s226 = smul.addr %s223, 2
      %s227 = sadd.s32 %s225, %s226
      %s228 = smul.addr %s227, 8
      %s229 = scalar_lea.vmem %s4, %s228
      %p231 = scmp.eq.s32.totalorder %s23, 0
      // Predicated region
      $region33: #{malconv_forward.1} parent=31 // pred_check
        %p232 = pneg %p231
      $region34: #{malconv_forward.1} parent=31 // pred_check_branch
        %234 = sbr.rel (%p232) target = $region36
      $region35: #{malconv_forward.1} parent=31 // pred_region
        %235 = vst [vmem:[%s229] sm:$0xff] -inf
      $region36: #{malconv_forward.1} parent=31 // pred_fallthru
        _
      %v236 = vld [vmem:[%s218] sm:$0xf]
      %v237 = vld [vmem:[%s218 + $0x4] sm:$0xf]
      %v238 = vld [vmem:[%s2] sm:$0xff]
      %v239 = vld [vmem:[%s2 + $0x8] sm:$0xff]
      %v240 = vld [vmem:[%s2 + $0x10] sm:$0xff]
      %v241 = vld [vmem:[%s2 + $0x18] sm:$0xff]
      %v242 = vld [vmem:[%s2 + $0x20] sm:$0xff]
      %v243 = vld [vmem:[%s2 + $0x28] sm:$0xff]
      %v244 = vld [vmem:[%s2 + $0x30] sm:$0xff]
      %v245 = vld [vmem:[%s2 + $0x38] sm:$0xff]
      %v246 = vld [vmem:[%s3] sm:$0x3]
      %v248 = vlaneseq
      %v249 = vshrl.u32 %v248, 7
      %v250 = vsub.s32 0, %v249
      %v251 = vrot.slane %v246, %v250
      %v252 = vlaneseq
      %v253 = vshrl.u32 %v252, 7
      %v254 = vsub.s32 1, %v253
      %v255 = vrot.slane %v246, %v254
      %v260 = vunpack.c.l.b16 %v236
      %v261 = vunpack.c.l.b16 %v237
      %v262 = vpack.c.b16 %v261, %v260
      %v271 = vunpack.c.l.b16 %v238
      %v272 = vunpack.c.h.b16 %v238
      %v273 = vunpack.c.l.b16 %v239
      %v274 = vunpack.c.h.b16 %v239
      %v275 = vunpack.c.l.b16 %v240
      %v276 = vunpack.c.h.b16 %v240
      %v277 = vunpack.c.l.b16 %v241
      %v278 = vunpack.c.h.b16 %v241
      %v279 = vunpack.c.l.b16 %v242
      %v280 = vunpack.c.h.b16 %v242
      %v281 = vunpack.c.l.b16 %v243
      %v282 = vunpack.c.h.b16 %v243
      %v283 = vunpack.c.l.b16 %v244
      %v284 = vunpack.c.h.b16 %v244
      %v285 = vunpack.c.l.b16 %v245
      %v286 = vunpack.c.h.b16 %v245
      %v287 = vpack.c.b16 %v273, %v271
      %v288 = vpack.c.b16 %v274, %v272
      %v289 = vpack.c.b16 %v277, %v275
      %v290 = vpack.c.b16 %v278, %v276
      %v291 = vpack.c.b16 %v281, %v279
      %v292 = vpack.c.b16 %v282, %v280
      %v293 = vpack.c.b16 %v285, %v283
      %v294 = vpack.c.b16 %v286, %v284
      %vm303 = vcmask 523264
      %v305 = vsel %vm303, %v262, 0
      %307 = vmatprep.subr.bf16.mxu0 %v288
      %308 = vmatpush1.bf16.msra.mxu0 %v287
      %309 = vmatprep.subr.bf16.mxu0 %v290
      %310 = vmatpush1.bf16.msra.mxu0 %v289
      %311 = vmatprep.subr.bf16.mxu0 %v292
      %312 = vmatpush1.bf16.msra.mxu0 %v291
      %313 = vmatprep.subr.bf16.mxu0 %v294
      %314 = vmatpush1.bf16.msra.mxu0 %v293
      %315 = vmatprep.subr.bf16.mxu0 0
      %316 = vmatpush1.bf16.msra.mxu0 0
      %317 = vmatprep.subr.bf16.mxu0 0
      %318 = vmatpush1.bf16.msra.mxu0 0
      %319 = vmatprep.subr.bf16.mxu0 0
      %320 = vmatpush1.bf16.msra.mxu0 0
      %321 = vmatprep.subr.bf16.mxu0 0
      %322 = vmatpush1.bf16.msra.mxu0 0
      %323 = vmatprep.subr.bf16.mxu0 0
      %324 = vmatpush1.bf16.msra.mxu0 0
      %325 = vmatprep.subr.bf16.mxu0 0
      %326 = vmatpush1.bf16.msra.mxu0 0
      %327 = vmatprep.subr.bf16.mxu0 0
      %328 = vmatpush1.bf16.msra.mxu0 0
      %329 = vmatprep.subr.bf16.mxu0 0
      %330 = vmatpush1.bf16.msra.mxu0 0
      %331 = vmatprep.subr.bf16.mxu0 0
      %332 = vmatpush1.bf16.msra.mxu0 0
      %333 = vmatprep.subr.bf16.mxu0 0
      %334 = vmatpush1.bf16.msra.mxu0 0
      %335 = vmatprep.subr.bf16.mxu0 0
      %336 = vmatpush1.bf16.msra.mxu0 0
      %337 = vmatprep.subr.bf16.mxu0 0
      %338 = vmatpush1.bf16.msra.mxu0 0
      %339 = vmatprep.mubr.bf16.mxu0 0
      %340 = vmatmul.mubr.bf16.gmra.mrb[0].mxu0 %v305
      %v341 = vpop.f32.mrb[0].mxu0
      %v342 = vadd.f32 %v251, %v341
      %v343 = vpop.f32.mrb[0].mxu0
      %v344 = vadd.f32 %v255, %v343
      %v345 = vpop.f32.mrb[0].mxu0
      %v346 = vadd.f32 %v251, %v345
      %v347 = vpop.f32.mrb[0].mxu0
      %v348 = vadd.f32 %v255, %v347
      %349 = vdwg.mxu0
      %v350 = vxor.u32 %v344, 2147483648
      %v351 = vxor.u32 %v348, 2147483648
      %v352 = vmul.f32 %v350, 1.442695
      %v353 = vpow.pop %v352
      %v354 = vmul.f32 %v351, 1.442695
      %v355 = vpow.pop %v354
      %v356 = vadd.f32 %v353, 1.0
      %v357 = vadd.f32 %v355, 1.0
      %v358 = vrcp.pop %v356
      %v359 = vmul.f32 1.0, %v358
      %v360 = vrcp.pop %v357
      %v361 = vmul.f32 1.0, %v360
      %v362 = vmul.f32 %v342, %v359
      %v363 = vmul.f32 %v346, %v361
      %s364 = smul.u32 %s21, 2
      %s365 = sadd.s32 %s364, %s23
      %s366 = smul.u32 %s365, 16
      %v367 = vlaneseq
      %v368 = vshrl.u32 %v367, 7
      %v369 = vadd.s32 %v368, 8
      %v370 = vstv %s366
      %v371 = vadd.s32 %v370, %v368
      %v372 = vadd.s32 %v370, %v369
      %s373 = sld [smem:[#allocation3]]
      %v374 = vstv %s373
      %vm375 = vcmp.lt.s32.totalorder %v371, %v374
      %vm376 = vcmp.lt.s32.totalorder %v372, %v374
      %v377 = vsel %vm375, %v362, -inf
      %v378 = vsel %vm376, %v363, -inf
      %v379 = vmax.f32 %v377, %v378
      %v380 = vld [vmem:[%s229] sm:$0xff]
      %v381 = vmax.f32 %v380, %v379
      %382 = vst [vmem:[%s229] sm:$0xff] %v381
      %p383 = scmp.lt.s32.totalorder %s21, 1
      %s384 = scalar_select %p383, %s21, 1
      %p385 = scmp.lt.s32.totalorder %s22, 1
      %s386 = scalar_select %p385, %s22, 1
      %s387 = smul.addr %s384, 2
      %s388 = sadd.s32 %s386, %s387
      %s389 = smul.addr %s388, 8
      %s390 = scalar_lea.vmem %s4, %s389
      // Predicated region
      $region37: #{malconv_forward.1} parent=31 // pred_check
        %p391 = pneg %p129
      $region38: #{malconv_forward.1} parent=31 // pred_check_branch
        %393 = sbr.rel (%p391) target = $region40
      $region39: #{malconv_forward.1} parent=31 // pred_region
        _
      $region40: #{malconv_forward.1} parent=31 // pred_fallthru
        _
    $region32: #{malconv_forward.1} parent=5 // pred_fallthru
      _
    %p394 = scmp.le.s32.totalorder 2, %s11
    // Predicated region
    $region41: #{malconv_forward.1} parent=5 // pred_check
      %p395 = pneg %p394
    $region42: #{malconv_forward.1} parent=5 // pred_check_branch
      %397 = sbr.rel (%p395) target = $region44
    $region43: #{malconv_forward.1} parent=5 // pred_region
      %s398 = ssub.s32 %s11, 2
      // Predicated region
      $region45: #{malconv_forward.1} parent=43 // pred_check
        %p399 = pneg %p135
      $region46: #{malconv_forward.1} parent=43 // pred_check_branch
        %401 = sbr.rel (%p399) target = $region48
      $region47: #{malconv_forward.1} parent=43 // pred_region
        %p402 = scmp.lt.s32.totalorder %s24, 1
        %s403 = scalar_select %p402, %s24, 1
        %p404 = scmp.lt.s32.totalorder %s25, 1
        %s405 = scalar_select %p404, %s25, 1
        %s406 = smul.addr %s403, 2
        %s407 = sadd.s32 %s405, %s406
        %s408 = smul.addr %s407, 8
        %s409 = scalar_lea.vmem %s4, %s408
      $region48: #{malconv_forward.1} parent=43 // pred_fallthru
        _
    $region44: #{malconv_forward.1} parent=5 // pred_fallthru
      _
  $region6: #{malconv_forward.1} parent=0 // loop_footer
    %s15 = sadd.s32 1, %s11
  $region7: #{malconv_forward.1} parent=0 // loop_footer_branch
    %10 = sbr.rel target = $region3
  $region8: #{malconv_forward.1} parent=0 // loop_exit
    _

</llo_original>
